<compile_context>
chip_gen: v6e
topology: v6e:2x2x1
jax: 0.10.0
libtpu: 0.0.40
codegen_flags: <defaults>
</compile_context>

<pallas_src>
import functools

import jax
import jax.numpy as jnp
from jax.experimental import pallas as pl
from jax.experimental.pallas import tpu as pltpu


def _mlp_kernel(xp_ref, w1_ref, b1_ref, w2_ref, b2_ref, o_ref):
    # fc1 (packed): (tr, 128) @ (128, pack*H) on the MXU, f32 accumulation,
    # then bias + relu on the VPU.
    h = jnp.dot(xp_ref[...], w1_ref[...], preferred_element_type=jnp.float32)
    h = jnp.maximum(h + b1_ref[...], 0.0)
    # dropout1: identity at inference time.
    # TODO(synk): training-mode dropout would need pltpu.prng_seed +
    # pltpu.prng_random_bits seeded per batch tile (per pl.program_id(0)).
    # fc2 (packed): segmented reduction expressed as a second MXU matmul
    # against the block-diagonal w2 selector -> (tr, pack).
    y = jnp.dot(h, w2_ref[...], preferred_element_type=jnp.float32)
    o_ref[...] = y + b2_ref[0]                      # scalar bias from SMEM


def simple_nn_forward(x, w1, b1, w2, b2, *, block_b=8192):
    """SimpleNN forward.  x: (B, D), w1: (D, H), b1: (H,), w2: (H, 1), b2: (1,)."""
    B, D = x.shape
    H = w1.shape[1]

    # Pack `pack` samples per 128-lane row (4 for D=32); fall back to 1 if D
    # does not divide 128 (formulation degenerates to the unpacked kernel).
    pack = 128 // D if (D <= 128 and 128 % D == 0) else 1

    b_eff = B
    if B % pack != 0:
        # Rare ragged case only: pad a handful of rows so the packing reshape
        # is valid.  (Full-array copy; large-B callers should use B % pack == 0.)
        b_eff = pl.cdiv(B, pack) * pack
        x = jnp.pad(x, ((0, b_eff - B), (0, 0)))

    rows = b_eff // pack                 # packed rows
    dp, hp = pack * D, pack * H          # packed lane widths (128, 256 for D=32)

    xp = x.reshape(rows, dp)             # row-major contiguous -> free under jit

    # Tiny block-diagonal packed parameters (built once per call).
    eye = jnp.eye(pack, dtype=jnp.float32)
    w1p = jnp.kron(eye, w1.astype(jnp.float32))                        # (dp, hp)
    b1p = jnp.tile(b1.reshape(1, H).astype(jnp.float32), (1, pack))    # (1, hp)
    w2p = jnp.kron(eye, w2.reshape(H, 1).astype(jnp.float32))          # (hp, pack)
    b2p = b2.reshape(1).astype(jnp.float32)                            # SMEM scalar

    # Batch tile: block_b samples -> tr packed rows (multiple of 8 sublanes),
    # clamped so the x / h / out blocks stay a few MB of VMEM on all chips.
    block_b = max(8 * pack, min(block_b, 32768))
    tr = pl.cdiv(block_b, 8 * pack) * 8
    tr = min(tr, pl.cdiv(rows, 8) * 8)
    # Ragged last tile is fine: OOB reads are per-row garbage (rows are
    # independent), OOB writes are masked by Pallas.
    grid = (pl.cdiv(rows, tr),)

    out = pl.pallas_call(
        _mlp_kernel,
        out_shape=jax.ShapeDtypeStruct((rows, pack), jnp.float32),
        grid_spec=pl.GridSpec(
            grid=grid,
            in_specs=[
                pl.BlockSpec((tr, dp), lambda i: (i, 0)),     # packed x, batch-tiled
                pl.BlockSpec((dp, hp), lambda i: (0, 0)),     # block-diag w1, resident
                pl.BlockSpec((1, hp), lambda i: (0, 0)),      # tiled b1, resident
                pl.BlockSpec((hp, pack), lambda i: (0, 0)),   # block-diag w2, resident
                pl.BlockSpec(memory_space=pltpu.MemorySpace.SMEM),  # b2 scalar
            ],
            out_specs=pl.BlockSpec((tr, pack), lambda i: (i, 0)),
        ),
        compiler_params=pltpu.CompilerParams(
            # TODO(synk): on v7x, verify both TensorCores pick up this axis in
            # xprof; if not, switch it to pltpu.CORE_PARALLEL.
            dimension_semantics=("parallel",),
        ),
    )(xp, w1p, b1p, w2p, b2p)

    # (rows, pack) is contiguous in sample order -> free reshape back to (B, 1).
    return out.reshape(-1)[:B].reshape(B, 1)


if __name__ == "__main__":
    # Small shapes consistent with the module: input_dim=32, hidden_dim=64.
    B, D, H = 64, 32, 64

    key = jax.random.PRNGKey(0)
    kx, kw1, kb1, kw2, kb2 = jax.random.split(key, 5)

    x = jax.random.normal(kx, (B, D), dtype=jnp.float32)

    # Deterministic parameter init (PyTorch-Linear-style uniform bounds).
    bound1 = 1.0 / jnp.sqrt(D)
    w1 = jax.random.uniform(kw1, (D, H), minval=-bound1, maxval=bound1,
                            dtype=jnp.float32)
    b1 = jax.random.uniform(kb1, (H,), minval=-bound1, maxval=bound1,
                            dtype=jnp.float32)
    bound2 = 1.0 / jnp.sqrt(H)
    w2 = jax.random.uniform(kw2, (H, 1), minval=-bound2, maxval=bound2,
                            dtype=jnp.float32)
    b2 = jax.random.uniform(kb2, (1,), minval=-bound2, maxval=bound2,
                            dtype=jnp.float32)

    # block_b=32 samples -> 8 packed rows per tile -> a 2-step pipelined grid
    # even at this small demo batch (default block_b=8192 for real workloads).
    fwd = jax.jit(functools.partial(simple_nn_forward, block_b=32))
    out = fwd(x, w1, b1, w2, b2)
    jax.block_until_ready(out)

    assert out.shape == (B, 1)

    # Reference: pure f32 module math.  Loose tolerance only to stay robust to
    # whatever f32-matmul pass count the MXU uses.
    ref = jnp.maximum(x @ w1 + b1.reshape(1, H), 0.0) @ w2 + b2.reshape(1, 1)
    assert jnp.allclose(out, ref, atol=5e-2, rtol=5e-2), (
        f"max abs err = {jnp.max(jnp.abs(out - ref))}")

    print("KERNEL_OK")
</pallas_src>

<mosaic_0001>
module attributes {stable_mosaic.version = 11 : i64} {
  func.func @_mlp_kernel(%arg0: i32, %arg1: memref<8x128xf32, #tpu.memory_space<vmem>>, %arg2: memref<128x256xf32, #tpu.memory_space<vmem>>, %arg3: memref<1x256xf32, #tpu.memory_space<vmem>>, %arg4: memref<256x4xf32, #tpu.memory_space<vmem>>, %arg5: memref<1xf32, #tpu.memory_space<smem>>, %arg6: memref<8x4xf32, #tpu.memory_space<vmem>>) attributes {dimension_semantics = [#tpu.dimension_semantics<parallel>], iteration_bounds = array<i64: 2>, scalar_prefetch = 0 : i64, scratch_operands = 0 : i64, tpu.core_type = #tpu.core_type<tc>, window_params = [{transform_indices = @transform_0, window_bounds = array<i64: 8, 128>}, {pipeline_mode = #tpu.pipeline_mode<synchronous>, transform_indices = @transform_1, window_bounds = array<i64: 128, 256>}, {pipeline_mode = #tpu.pipeline_mode<synchronous>, transform_indices = @transform_2, window_bounds = array<i64: 1, 256>}, {pipeline_mode = #tpu.pipeline_mode<synchronous>, transform_indices = @transform_3, window_bounds = array<i64: 256, 4>}, {transform_indices = @transform_4, window_bounds = array<i64: 1>}, {transform_indices = @transform_5, window_bounds = array<i64: 8, 4>}]} {
    %c0 = arith.constant 0 : index
    %c0_0 = arith.constant 0 : index
    %0 = vector.load %arg1[%c0, %c0_0] : memref<8x128xf32, #tpu.memory_space<vmem>>, vector<8x128xf32>
    %c0_1 = arith.constant 0 : index
    %c0_2 = arith.constant 0 : index
    %1 = vector.load %arg2[%c0_1, %c0_2] : memref<128x256xf32, #tpu.memory_space<vmem>>, vector<128x256xf32>
    %cst = arith.constant dense<0.000000e+00> : vector<8x256xf32>
    %2 = tpu.matmul %0, %1, %cst {dimension_numbers = #tpu.dot_dimension_numbers<[1], [0], [0], [1], [0, 0, 1, 1], [], []>} : vector<8x128xf32>, vector<128x256xf32>, vector<8x256xf32> -> vector<8x256xf32>
    %c0_3 = arith.constant 0 : index
    %c0_4 = arith.constant 0 : index
    %3 = vector.load %arg3[%c0_3, %c0_4] : memref<1x256xf32, #tpu.memory_space<vmem>>, vector<1x256xf32>
    %4 = vector.broadcast %3 : vector<1x256xf32> to vector<8x256xf32>
    %5 = arith.addf %2, %4 : vector<8x256xf32>
    %cst_5 = arith.constant 0.000000e+00 : f32
    %6 = vector.broadcast %cst_5 : f32 to vector<8x256xf32>
    %7 = arith.maximumf %5, %6 : vector<8x256xf32>
    %c0_6 = arith.constant 0 : index
    %c0_7 = arith.constant 0 : index
    %8 = vector.load %arg4[%c0_6, %c0_7] : memref<256x4xf32, #tpu.memory_space<vmem>>, vector<256x4xf32>
    %cst_8 = arith.constant dense<0.000000e+00> : vector<8x4xf32>
    %9 = tpu.matmul %7, %8, %cst_8 {dimension_numbers = #tpu.dot_dimension_numbers<[1], [0], [0], [1], [0, 0, 1, 1], [], []>} : vector<8x256xf32>, vector<256x4xf32>, vector<8x4xf32> -> vector<8x4xf32>
    %c0_9 = arith.constant 0 : index
    %10 = memref.load %arg5[%c0_9] : memref<1xf32, #tpu.memory_space<smem>>
    %11 = vector.broadcast %10 : f32 to vector<8x4xf32>
    %12 = arith.addf %9, %11 : vector<8x4xf32>
    %c0_10 = arith.constant 0 : index
    %c0_11 = arith.constant 0 : index
    %13 = vector.load %arg6[%c0_10, %c0_11] : memref<8x4xf32, #tpu.memory_space<vmem>>, vector<8x4xf32>
    tpu.vector_store %arg6[%c0_10, %c0_11], %12 {strides = array<i32>} : memref<8x4xf32, #tpu.memory_space<vmem>>, vector<8x4xf32>,
    return
  }
  func.func @transform_0(%arg0: i32) -> (i32, i32) {
    %c0_i32 = arith.constant 0 : i32
    %c0_i32_0 = arith.constant 0 : i32
    return %arg0, %c0_i32 : i32, i32
  }
  func.func @transform_1(%arg0: i32) -> (i32, i32) {
    %c0_i32 = arith.constant 0 : i32
    %c0_i32_0 = arith.constant 0 : i32
    %c0_i32_1 = arith.constant 0 : i32
    return %c0_i32, %c0_i32_0 : i32, i32
  }
  func.func @transform_2(%arg0: i32) -> (i32, i32) {
    %c0_i32 = arith.constant 0 : i32
    %c0_i32_0 = arith.constant 0 : i32
    %c0_i32_1 = arith.constant 0 : i32
    return %c0_i32, %c0_i32_0 : i32, i32
  }
  func.func @transform_3(%arg0: i32) -> (i32, i32) {
    %c0_i32 = arith.constant 0 : i32
    %c0_i32_0 = arith.constant 0 : i32
    %c0_i32_1 = arith.constant 0 : i32
    return %c0_i32, %c0_i32_0 : i32, i32
  }
  func.func @transform_4(%arg0: i32) -> i32 {
    %c0_i32 = arith.constant 0 : i32
    %c0_i32_0 = arith.constant 0 : i32
    return %c0_i32 : i32
  }
  func.func @transform_5(%arg0: i32) -> (i32, i32) {
    %c0_i32 = arith.constant 0 : i32
    %c0_i32_0 = arith.constant 0 : i32
    return %arg0, %c0_i32 : i32, i32
  }
}

</mosaic_0001>

<llo_original>
// kernel: simple_nn_forward.1
$region0: #{simple_nn_forward.1}
  #allocation0 [shape = 'u32[]', space=smem, size = 0x4, offset = 0x4, fixed_abs, tag = 'smem constant byte address 0x4 - core index']
  #allocation1 [shape = 'u32[144,128]{1,0:T(1,128)}', space=vmem, size = 0x12000, scoped, tag = 'internal scratch']
  #allocation2 [shape = 'f32[1]{0:T(128)S(6)}', space=smem, size = 0x200, scoped, tag = 'scoped memory for simple_nn_forward.1']
  %s0 = inlined_call_operand.vmem [shape: f32[16,128], index: 0, kind: input, shape index: {}]
  %s1 = inlined_call_operand.vmem [shape: f32[128,256], index: 1, kind: input, shape index: {}]
  %s2 = inlined_call_operand.vmem [shape: f32[1,256], index: 2, kind: input, shape index: {}]
  %s3 = inlined_call_operand.vmem [shape: f32[256,4], index: 3, kind: input, shape index: {}]
  %s4 = inlined_call_operand.<no memory space> [shape: f32[1], index: 4, kind: input, shape index: {}]
  %s5 = inlined_call_operand.vmem [shape: f32[16,4], index: 5, kind: output, shape index: {}]
  %s6 = sld [smem:[#allocation0]]
  $region53: #{simple_nn_forward.1} parent=0
    _
  %s8 = ssub.s32 1, %s6
  %s9 = scalar_select 0, %s8, %s6
  %10 = sst [smem:[#allocation2]] %s4
  loop: start=0, step=1, limit=4
  $region2: #{simple_nn_forward.1} parent=0 // loop_pre_header
    _
  $region3: #{simple_nn_forward.1} parent=0 // loop_header
    %s12 = sphi 0, %s16
    %p13 = scmp.ge.s32.totalorder %s12, 4
    %s22 = sphi 0, %s24
    %s25 = sphi 0, %s22
    %s26 = sphi 0, %s25
    %s42 = sphi 0, %s26
    %s46 = sphi 0, %s46
    %s48 = sphi 0, %s46
    %s49 = sphi 0, %s48
    %s63 = sphi 0, %s49
    %s67 = sphi 0, %s67
    %s69 = sphi 0, %s67
    %s70 = sphi 0, %s69
    %s84 = sphi 0, %s70
    %s88 = sphi 0, %s88
    %s90 = sphi 0, %s88
    %s91 = sphi 0, %s90
    %s105 = sphi 0, %s91
    %s109 = sphi 0, %s109
    %s111 = sphi 0, %s109
    %s112 = sphi 0, %s111
    %s126 = sphi 0, %s112
    %s132 = sphi 0, %s134
    %s135 = sphi 0, %s132
    %s136 = sphi 0, %s135
    %s152 = sphi 0, %s136
  $region4: #{simple_nn_forward.1} parent=0 // loop_header_branch
    %15 = sbr.rel (%p13) target = $region8
  $region5: #{simple_nn_forward.1} parent=0 // loop_body
    %s17 = ssub.s32 %s12, 1
    %s18 = ssub.s32 %s12, 2
    %s19 = sadd.s32 %s12, 1
    %s20 = ssub.s32 %s12, %s19
    %p21 = scmp.eq.s32.totalorder %s20, 0
    %s23 = sadd.s32 %s22, 1
    %s24 = scalar_select %p21, %s22, %s23
    %p27 = pneg %p21
    %p28 = scmp.eq.s32.totalorder %s12, 1
    %p29 = por %p27, %p28
    %p30 = scmp.ne.s32.totalorder %s22, %s25
    %p31 = scmp.eq.s32.totalorder %s12, 0
    %p32 = por %p30, %p31
    %p33 = scmp.ne.s32.totalorder %s22, %s25
    %p34 = scmp.eq.s32.totalorder %s17, 1
    %p35 = por %p33, %p34
    %p36 = scmp.ne.s32.totalorder %s25, %s26
    %p37 = scmp.eq.s32.totalorder %s17, 0
    %p38 = por %p36, %p37
    %p39 = scmp.ne.s32.totalorder %s25, %s26
    %p40 = scmp.eq.s32.totalorder %s18, 1
    %p41 = por %p39, %p40
    %p43 = scmp.ne.s32.totalorder %s26, %s42
    %p44 = scmp.eq.s32.totalorder %s18, 0
    %p45 = por %p43, %p44
    %s47 = sadd.s32 %s46, 1
    %p50 = scmp.eq.s32.totalorder %s12, 1
    %p51 = scmp.ne.s32.totalorder %s46, %s48
    %p52 = scmp.eq.s32.totalorder %s12, 0
    %p53 = por %p51, %p52
    %p54 = scmp.ne.s32.totalorder %s46, %s48
    %p55 = scmp.eq.s32.totalorder %s17, 1
    %p56 = por %p54, %p55
    %p57 = scmp.ne.s32.totalorder %s48, %s49
    %p58 = scmp.eq.s32.totalorder %s17, 0
    %p59 = por %p57, %p58
    %p60 = scmp.ne.s32.totalorder %s48, %s49
    %p61 = scmp.eq.s32.totalorder %s18, 1
    %p62 = por %p60, %p61
    %p64 = scmp.ne.s32.totalorder %s49, %s63
    %p65 = scmp.eq.s32.totalorder %s18, 0
    %p66 = por %p64, %p65
    %s68 = sadd.s32 %s67, 1
    %p71 = scmp.eq.s32.totalorder %s12, 1
    %p72 = scmp.ne.s32.totalorder %s67, %s69
    %p73 = scmp.eq.s32.totalorder %s12, 0
    %p74 = por %p72, %p73
    %p75 = scmp.ne.s32.totalorder %s67, %s69
    %p76 = scmp.eq.s32.totalorder %s17, 1
    %p77 = por %p75, %p76
    %p78 = scmp.ne.s32.totalorder %s69, %s70
    %p79 = scmp.eq.s32.totalorder %s17, 0
    %p80 = por %p78, %p79
    %p81 = scmp.ne.s32.totalorder %s69, %s70
    %p82 = scmp.eq.s32.totalorder %s18, 1
    %p83 = por %p81, %p82
    %p85 = scmp.ne.s32.totalorder %s70, %s84
    %p86 = scmp.eq.s32.totalorder %s18, 0
    %p87 = por %p85, %p86
    %s89 = sadd.s32 %s88, 1
    %p92 = scmp.eq.s32.totalorder %s12, 1
    %p93 = scmp.ne.s32.totalorder %s88, %s90
    %p94 = scmp.eq.s32.totalorder %s12, 0
    %p95 = por %p93, %p94
    %p96 = scmp.ne.s32.totalorder %s88, %s90
    %p97 = scmp.eq.s32.totalorder %s17, 1
    %p98 = por %p96, %p97
    %p99 = scmp.ne.s32.totalorder %s90, %s91
    %p100 = scmp.eq.s32.totalorder %s17, 0
    %p101 = por %p99, %p100
    %p102 = scmp.ne.s32.totalorder %s90, %s91
    %p103 = scmp.eq.s32.totalorder %s18, 1
    %p104 = por %p102, %p103
    %p106 = scmp.ne.s32.totalorder %s91, %s105
    %p107 = scmp.eq.s32.totalorder %s18, 0
    %p108 = por %p106, %p107
    %s110 = sadd.s32 %s109, 1
    %p113 = scmp.eq.s32.totalorder %s12, 1
    %p114 = scmp.ne.s32.totalorder %s109, %s111
    %p115 = scmp.eq.s32.totalorder %s12, 0
    %p116 = por %p114, %p115
    %p117 = scmp.ne.s32.totalorder %s109, %s111
    %p118 = scmp.eq.s32.totalorder %s17, 1
    %p119 = por %p117, %p118
    %p120 = scmp.ne.s32.totalorder %s111, %s112
    %p121 = scmp.eq.s32.totalorder %s17, 0
    %p122 = por %p120, %p121
    %p123 = scmp.ne.s32.totalorder %s111, %s112
    %p124 = scmp.eq.s32.totalorder %s18, 1
    %p125 = por %p123, %p124
    %p127 = scmp.ne.s32.totalorder %s112, %s126
    %p128 = scmp.eq.s32.totalorder %s18, 0
    %p129 = por %p127, %p128
    %s130 = ssub.s32 %s12, %s19
    %p131 = scmp.eq.s32.totalorder %s130, 0
    %s133 = sadd.s32 %s132, 1
    %s134 = scalar_select %p131, %s132, %s133
    %p137 = pneg %p131
    %p138 = scmp.eq.s32.totalorder %s12, 1
    %p139 = por %p137, %p138
    %p140 = scmp.ne.s32.totalorder %s132, %s135
    %p141 = scmp.eq.s32.totalorder %s12, 0
    %p142 = por %p140, %p141
    %p143 = scmp.ne.s32.totalorder %s132, %s135
    %p144 = scmp.eq.s32.totalorder %s17, 1
    %p145 = por %p143, %p144
    %p146 = scmp.ne.s32.totalorder %s135, %s136
    %p147 = scmp.eq.s32.totalorder %s17, 0
    %p148 = por %p146, %p147
    %p149 = scmp.ne.s32.totalorder %s135, %s136
    %p150 = scmp.eq.s32.totalorder %s18, 1
    %p151 = por %p149, %p150
    %p153 = scmp.ne.s32.totalorder %s136, %s152
    %p154 = scmp.eq.s32.totalorder %s18, 0
    %p155 = por %p153, %p154
    %p156 = scmp.le.s32.totalorder 1, %s12
    %p157 = scmp.lt.s32.totalorder %s12, 3
    %p158 = pnand %p156, %p157
    %p159 = pneg %p158
    // Predicated region
    $region9: #{simple_nn_forward.1} parent=5 // pred_check
      _
    $region10: #{simple_nn_forward.1} parent=5 // pred_check_branch
      %161 = sbr.rel (%p158) target = $region12
    $region11: #{simple_nn_forward.1} parent=5 // pred_region
      %s162 = ssub.s32 %s12, 1
      // Predicated region
      $region13: #{simple_nn_forward.1} parent=11 // pred_check
        %p163 = pneg %p59
      $region14: #{simple_nn_forward.1} parent=11 // pred_check_branch
        %165 = sbr.rel (%p163) target = $region16
      $region15: #{simple_nn_forward.1} parent=11 // pred_region
        _
      $region16: #{simple_nn_forward.1} parent=11 // pred_fallthru
        _
      // Predicated region
      $region17: #{simple_nn_forward.1} parent=11 // pred_check
        %p166 = pneg %p80
      $region18: #{simple_nn_forward.1} parent=11 // pred_check_branch
        %168 = sbr.rel (%p166) target = $region20
      $region19: #{simple_nn_forward.1} parent=11 // pred_region
        _
      $region20: #{simple_nn_forward.1} parent=11 // pred_fallthru
        _
      // Predicated region
      $region21: #{simple_nn_forward.1} parent=11 // pred_check
        %p169 = pneg %p101
      $region22: #{simple_nn_forward.1} parent=11 // pred_check_branch
        %171 = sbr.rel (%p169) target = $region24
      $region23: #{simple_nn_forward.1} parent=11 // pred_region
        _
      $region24: #{simple_nn_forward.1} parent=11 // pred_fallthru
        _
      // Predicated region
      $region25: #{simple_nn_forward.1} parent=11 // pred_check
        %p172 = pneg %p122
      $region26: #{simple_nn_forward.1} parent=11 // pred_check_branch
        %174 = sbr.rel (%p172) target = $region28
      $region27: #{simple_nn_forward.1} parent=11 // pred_region
        _
      $region28: #{simple_nn_forward.1} parent=11 // pred_fallthru
        _
    $region12: #{simple_nn_forward.1} parent=5 // pred_fallthru
      _
    %p175 = scmp.lt.s32.totalorder %s12, 2
    // Predicated region
    $region29: #{simple_nn_forward.1} parent=5 // pred_check
      %p176 = pneg %p175
    $region30: #{simple_nn_forward.1} parent=5 // pred_check_branch
      %178 = sbr.rel (%p176) target = $region32
    $region31: #{simple_nn_forward.1} parent=5 // pred_region
      // Predicated region
      $region33: #{simple_nn_forward.1} parent=31 // pred_check
        %p179 = pneg %p32
      $region34: #{simple_nn_forward.1} parent=31 // pred_check_branch
        %181 = sbr.rel (%p179) target = $region36
      $region35: #{simple_nn_forward.1} parent=31 // pred_region
        %p182 = scmp.lt.s32.totalorder %s12, 1
        %s183 = scalar_select %p182, %s12, 1
        %s184 = smul.addr %s183, 8
        %s185 = scalar_lea.vmem %s0, %s184
      $region36: #{simple_nn_forward.1} parent=31 // pred_fallthru
        _
    $region32: #{simple_nn_forward.1} parent=5 // pred_fallthru
      _
    %p186 = scmp.le.s32.totalorder 1, %s12
    %p187 = scmp.lt.s32.totalorder %s12, 3
    %p188 = pnand %p186, %p187
    %p189 = pneg %p188
    // Predicated region
    $region37: #{simple_nn_forward.1} parent=5 // pred_check
      _
    $region38: #{simple_nn_forward.1} parent=5 // pred_check_branch
      %191 = sbr.rel (%p188) target = $region40
    $region39: #{simple_nn_forward.1} parent=5 // pred_region
      %s192 = ssub.s32 %s12, 1
      %p193 = scmp.lt.s32.totalorder %s17, 1
      %s194 = scalar_select %p193, %s17, 1
      %s195 = smul.addr %s194, 8
      %s196 = scalar_lea.vmem %s0, %s195
      %p197 = pneg %p38
      %p198 = pneg %p35
      %p199 = pneg %p59
      %p200 = pneg %p56
      %p201 = pneg %p80
      %p202 = pneg %p77
      %p203 = pneg %p101
      %p204 = pneg %p98
      %p205 = pneg %p122
      %p206 = pneg %p119
      %p207 = pneg %p148
      %p208 = pneg %p145
      %p209 = scmp.lt.s32.totalorder %s17, 1
      %s210 = scalar_select %p209, %s17, 1
      %s211 = smul.addr %s210, 8
      %s212 = scalar_lea.vmem %s5, %s211
      %p213 = scmp.lt.s32.totalorder %s17, 1
      %s214 = scalar_select %p213, %s17, 1
      %s215 = smul.addr %s214, 8
      %s216 = scalar_lea.vmem %s0, %s215
      %p217 = scmp.lt.s32.totalorder %s17, 1
      %s218 = scalar_select %p217, %s17, 1
      %s219 = smul.addr %s218, 8
      %s220 = scalar_lea.vmem %s5, %s219
      %v221 = vld [vmem:[%s216] sm:$0xff]
      %v222 = vld [vmem:[%s1] sm:$0xff]
      %v223 = vld [vmem:[%s1 + $0x8] sm:$0xff]
      %v224 = vld [vmem:[%s1 + $0x10] sm:$0xff]
      %v225 = vld [vmem:[%s1 + $0x18] sm:$0xff]
      %v226 = vld [vmem:[%s1 + $0x20] sm:$0xff]
      %v227 = vld [vmem:[%s1 + $0x28] sm:$0xff]
      %v228 = vld [vmem:[%s1 + $0x30] sm:$0xff]
      %v229 = vld [vmem:[%s1 + $0x38] sm:$0xff]
      %v230 = vld [vmem:[%s1 + $0x40] sm:$0xff]
      %v231 = vld [vmem:[%s1 + $0x48] sm:$0xff]
      %v232 = vld [vmem:[%s1 + $0x50] sm:$0xff]
      %v233 = vld [vmem:[%s1 + $0x58] sm:$0xff]
      %v234 = vld [vmem:[%s1 + $0x60] sm:$0xff]
      %v235 = vld [vmem:[%s1 + $0x68] sm:$0xff]
      %v236 = vld [vmem:[%s1 + $0x70] sm:$0xff]
      %v237 = vld [vmem:[%s1 + $0x78] sm:$0xff]
      %v238 = vld [vmem:[%s1 + $0x80] sm:$0xff]
      %v239 = vld [vmem:[%s1 + $0x88] sm:$0xff]
      %v240 = vld [vmem:[%s1 + $0x90] sm:$0xff]
      %v241 = vld [vmem:[%s1 + $0x98] sm:$0xff]
      %v242 = vld [vmem:[%s1 + $0xa0] sm:$0xff]
      %v243 = vld [vmem:[%s1 + $0xa8] sm:$0xff]
      %v244 = vld [vmem:[%s1 + $0xb0] sm:$0xff]
      %v245 = vld [vmem:[%s1 + $0xb8] sm:$0xff]
      %v246 = vld [vmem:[%s1 + $0xc0] sm:$0xff]
      %v247 = vld [vmem:[%s1 + $0xc8] sm:$0xff]
      %v248 = vld [vmem:[%s1 + $0xd0] sm:$0xff]
      %v249 = vld [vmem:[%s1 + $0xd8] sm:$0xff]
      %v250 = vld [vmem:[%s1 + $0xe0] sm:$0xff]
      %v251 = vld [vmem:[%s1 + $0xe8] sm:$0xff]
      %v252 = vld [vmem:[%s1 + $0xf0] sm:$0xff]
      %v253 = vld [vmem:[%s1 + $0xf8] sm:$0xff]
      %v254 = vld [vmem:[%s2] sm:$0x3]
      %v256 = vlaneseq
      %v257 = vshrl.u32 %v256, 7
      %v258 = vsub.s32 0, %v257
      %v259 = vrot.slane %v254, %v258
      %v260 = vlaneseq
      %v261 = vshrl.u32 %v260, 7
      %v262 = vsub.s32 1, %v261
      %v263 = vrot.slane %v254, %v262
      %266 = vmatprep.subr.mxu0 %v253
      %267 = vmatpush1.msra.mxu0 %v252
      %268 = vmatprep.subr.mxu0 %v251
      %269 = vmatpush1.msra.mxu0 %v250
      %270 = vmatprep.subr.mxu0 %v249
      %271 = vmatpush1.msra.mxu0 %v248
      %272 = vmatprep.subr.mxu0 %v247
      %273 = vmatpush1.msra.mxu0 %v246
      %274 = vmatprep.subr.mxu0 %v245
      %275 = vmatpush1.msra.mxu0 %v244
      %276 = vmatprep.subr.mxu0 %v243
      %277 = vmatpush1.msra.mxu0 %v242
      %278 = vmatprep.subr.mxu0 %v241
      %279 = vmatpush1.msra.mxu0 %v240
      %280 = vmatprep.subr.mxu0 %v239
      %281 = vmatpush1.msra.mxu0 %v238
      %282 = vmatprep.subr.mxu0 %v237
      %283 = vmatpush1.msra.mxu0 %v236
      %284 = vmatprep.subr.mxu0 %v235
      %285 = vmatpush1.msra.mxu0 %v234
      %286 = vmatprep.subr.mxu0 %v233
      %287 = vmatpush1.msra.mxu0 %v232
      %288 = vmatprep.subr.mxu0 %v231
      %289 = vmatpush1.msra.mxu0 %v230
      %290 = vmatprep.subr.mxu0 %v229
      %291 = vmatpush1.msra.mxu0 %v228
      %292 = vmatprep.subr.mxu0 %v227
      %293 = vmatpush1.msra.mxu0 %v226
      %294 = vmatprep.subr.mxu0 %v225
      %295 = vmatpush1.msra.mxu0 %v224
      %296 = vmatprep.subr.mxu0 %v223
      %297 = vmatpush1.msra.mxu0 %v222
      %298 = vmatprep.subr.mxu0 0.0
      %299 = vmatpush2.msra.mxu0 0.0
      %300 = vmatprep.subr.mxu0 0.0
      %301 = vmatpush2.msra.mxu0 0.0
      %302 = vmatprep.subr.mxu0 0.0
      %303 = vmatpush2.msra.mxu0 0.0
      %304 = vmatprep.subr.mxu0 0.0
      %305 = vmatpush2.msra.mxu0 0.0
      %306 = vmatprep.subr.mxu0 0.0
      %307 = vmatpush2.msra.mxu0 0.0
      %308 = vmatprep.subr.mxu0 0.0
      %309 = vmatpush2.msra.mxu0 0.0
      %310 = vmatprep.subr.mxu0 0.0
      %311 = vmatpush2.msra.mxu0 0.0
      %312 = vmatprep.subr.mxu0 0.0
      %313 = vmatpush2.msra.mxu0 0.0
      %314 = vmatprep.subr.mxu0 0.0
      %315 = vmatpush2.msra.mxu0 0.0
      %316 = vmatprep.subr.mxu0 0.0
      %317 = vmatpush2.msra.mxu0 0.0
      %318 = vmatprep.subr.mxu0 0.0
      %319 = vmatpush2.msra.mxu0 0.0
      %320 = vmatprep.subr.mxu0 0.0
      %321 = vmatpush2.msra.mxu0 0.0
      %322 = vmatprep.subr.mxu0 0.0
      %323 = vmatpush2.msra.mxu0 0.0
      %324 = vmatprep.subr.mxu0 0.0
      %325 = vmatpush2.msra.mxu0 0.0
      %326 = vmatprep.subr.mxu0 0.0
      %327 = vmatpush2.msra.mxu0 0.0
      %328 = vmatprep.subr.mxu0 0.0
      %329 = vmatpush2.msra.mxu0 0.0
      %330 = vmatprep.mubr.f32.mxu0 0.0
      %331 = vmatmul.mubr.f32.gmra.mxu0 %v221
      %v332 = vpop.f32.mrf.mxu0
      %v333 = vadd.f32 %v259, %v332
      %v334 = vpop.f32.mrf.mxu0
      %v335 = vadd.f32 %v263, %v334
      %336 = vdwg.mxu0
      %v337 = vmax.f32 %v333, 0.0
      %v338 = vmax.f32 %v335, 0.0
      %v339 = vld [vmem:[%s3] sm:$0xff]
      %v340 = vld [vmem:[%s3 + $0x8] sm:$0xff]
      %v341 = vld [vmem:[%s3 + $0x10] sm:$0xff]
      %v342 = vld [vmem:[%s3 + $0x18] sm:$0xff]
      %v343 = vld [vmem:[%s3 + $0x20] sm:$0xff]
      %v344 = vld [vmem:[%s3 + $0x28] sm:$0xff]
      %v345 = vld [vmem:[%s3 + $0x30] sm:$0xff]
      %v346 = vld [vmem:[%s3 + $0x38] sm:$0xff]
      %v347 = vld [vmem:[%s3 + $0x40] sm:$0xff]
      %v348 = vld [vmem:[%s3 + $0x48] sm:$0xff]
      %v349 = vld [vmem:[%s3 + $0x50] sm:$0xff]
      %v350 = vld [vmem:[%s3 + $0x58] sm:$0xff]
      %v351 = vld [vmem:[%s3 + $0x60] sm:$0xff]
      %v352 = vld [vmem:[%s3 + $0x68] sm:$0xff]
      %v353 = vld [vmem:[%s3 + $0x70] sm:$0xff]
      %v354 = vld [vmem:[%s3 + $0x78] sm:$0xff]
      %v355 = vld [vmem:[%s3 + $0x80] sm:$0xff]
      %v356 = vld [vmem:[%s3 + $0x88] sm:$0xff]
      %v357 = vld [vmem:[%s3 + $0x90] sm:$0xff]
      %v358 = vld [vmem:[%s3 + $0x98] sm:$0xff]
      %v359 = vld [vmem:[%s3 + $0xa0] sm:$0xff]
      %v360 = vld [vmem:[%s3 + $0xa8] sm:$0xff]
      %v361 = vld [vmem:[%s3 + $0xb0] sm:$0xff]
      %v362 = vld [vmem:[%s3 + $0xb8] sm:$0xff]
      %v363 = vld [vmem:[%s3 + $0xc0] sm:$0xff]
      %v364 = vld [vmem:[%s3 + $0xc8] sm:$0xff]
      %v365 = vld [vmem:[%s3 + $0xd0] sm:$0xff]
      %v366 = vld [vmem:[%s3 + $0xd8] sm:$0xff]
      %v367 = vld [vmem:[%s3 + $0xe0] sm:$0xff]
      %v368 = vld [vmem:[%s3 + $0xe8] sm:$0xff]
      %v369 = vld [vmem:[%s3 + $0xf0] sm:$0xff]
      %v370 = vld [vmem:[%s3 + $0xf8] sm:$0xff]
      %s371 = sld [smem:[#allocation2]]
      %v372 = vstv %s371
      %373 = vmatprep.subr.mxu0 0.0
      %374 = vmatpush1.msra.mxu0 %v354
      %375 = vmatprep.subr.mxu0 0.0
      %376 = vmatpush1.msra.mxu0 %v353
      %377 = vmatprep.subr.mxu0 0.0
      %378 = vmatpush1.msra.mxu0 %v352
      %379 = vmatprep.subr.mxu0 0.0
      %380 = vmatpush1.msra.mxu0 %v351
      %381 = vmatprep.subr.mxu0 0.0
      %382 = vmatpush1.msra.mxu0 %v350
      %383 = vmatprep.subr.mxu0 0.0
      %384 = vmatpush1.msra.mxu0 %v349
      %385 = vmatprep.subr.mxu0 0.0
      %386 = vmatpush1.msra.mxu0 %v348
      %387 = vmatprep.subr.mxu0 0.0
      %388 = vmatpush1.msra.mxu0 %v347
      %389 = vmatprep.subr.mxu0 0.0
      %390 = vmatpush1.msra.mxu0 %v346
      %391 = vmatprep.subr.mxu0 0.0
      %392 = vmatpush1.msra.mxu0 %v345
      %393 = vmatprep.subr.mxu0 0.0
      %394 = vmatpush1.msra.mxu0 %v344
      %395 = vmatprep.subr.mxu0 0.0
      %396 = vmatpush1.msra.mxu0 %v343
      %397 = vmatprep.subr.mxu0 0.0
      %398 = vmatpush1.msra.mxu0 %v342
      %399 = vmatprep.subr.mxu0 0.0
      %400 = vmatpush1.msra.mxu0 %v341
      %401 = vmatprep.subr.mxu0 0.0
      %402 = vmatpush1.msra.mxu0 %v340
      %403 = vmatprep.subr.mxu0 0.0
      %404 = vmatpush1.msra.mxu0 %v339
      %405 = vmatprep.subr.mxu0 0.0
      %406 = vmatpush2.msra.mxu0 %v370
      %407 = vmatprep.subr.mxu0 0.0
      %408 = vmatpush2.msra.mxu0 %v369
      %409 = vmatprep.subr.mxu0 0.0
      %410 = vmatpush2.msra.mxu0 %v368
      %411 = vmatprep.subr.mxu0 0.0
      %412 = vmatpush2.msra.mxu0 %v367
      %413 = vmatprep.subr.mxu0 0.0
      %414 = vmatpush2.msra.mxu0 %v366
      %415 = vmatprep.subr.mxu0 0.0
      %416 = vmatpush2.msra.mxu0 %v365
      %417 = vmatprep.subr.mxu0 0.0
      %418 = vmatpush2.msra.mxu0 %v364
      %419 = vmatprep.subr.mxu0 0.0
      %420 = vmatpush2.msra.mxu0 %v363
      %421 = vmatprep.subr.mxu0 0.0
      %422 = vmatpush2.msra.mxu0 %v362
      %423 = vmatprep.subr.mxu0 0.0
      %424 = vmatpush2.msra.mxu0 %v361
      %425 = vmatprep.subr.mxu0 0.0
      %426 = vmatpush2.msra.mxu0 %v360
      %427 = vmatprep.subr.mxu0 0.0
      %428 = vmatpush2.msra.mxu0 %v359
      %429 = vmatprep.subr.mxu0 0.0
      %430 = vmatpush2.msra.mxu0 %v358
      %431 = vmatprep.subr.mxu0 0.0
      %432 = vmatpush2.msra.mxu0 %v357
      %433 = vmatprep.subr.mxu0 0.0
      %434 = vmatpush2.msra.mxu0 %v356
      %435 = vmatprep.subr.mxu0 0.0
      %436 = vmatpush2.msra.mxu0 %v355
      %437 = vmatprep.mubr.f32.mxu0 %v338
      %438 = vmatmul.mubr.f32.gmra.mxu0 %v337
      %v439 = vpop.f32.mrf.mxu0
      %v440 = vadd.f32 %v372, %v439
      %v441 = vpop.f32.mrf.mxu0
      %442 = vdwg.mxu0
      %vm443 = vcmask 31744
      %444 = vst.msk [vmem:[%s220] sm:$0xff] %vm443, %v440
      %p445 = scmp.lt.s32.totalorder %s17, 1
      %s446 = scalar_select %p445, %s17, 1
      %s447 = smul.addr %s446, 8
      %s448 = scalar_lea.vmem %s5, %s447
      // Predicated region
      $region41: #{simple_nn_forward.1} parent=39 // pred_check
        %p449 = pneg %p145
      $region42: #{simple_nn_forward.1} parent=39 // pred_check_branch
        %451 = sbr.rel (%p449) target = $region44
      $region43: #{simple_nn_forward.1} parent=39 // pred_region
        _
      $region44: #{simple_nn_forward.1} parent=39 // pred_fallthru
        _
    $region40: #{simple_nn_forward.1} parent=5 // pred_fallthru
      _
    %p452 = scmp.le.s32.totalorder 2, %s12
    // Predicated region
    $region45: #{simple_nn_forward.1} parent=5 // pred_check
      %p453 = pneg %p452
    $region46: #{simple_nn_forward.1} parent=5 // pred_check_branch
      %455 = sbr.rel (%p453) target = $region48
    $region47: #{simple_nn_forward.1} parent=5 // pred_region
      %s456 = ssub.s32 %s12, 2
      // Predicated region
      $region49: #{simple_nn_forward.1} parent=47 // pred_check
        %p457 = pneg %p151
      $region50: #{simple_nn_forward.1} parent=47 // pred_check_branch
        %459 = sbr.rel (%p457) target = $region52
      $region51: #{simple_nn_forward.1} parent=47 // pred_region
        %p460 = scmp.lt.s32.totalorder %s18, 1
        %s461 = scalar_select %p460, %s18, 1
        %s462 = smul.addr %s461, 8
        %s463 = scalar_lea.vmem %s5, %s462
      $region52: #{simple_nn_forward.1} parent=47 // pred_fallthru
        _
    $region48: #{simple_nn_forward.1} parent=5 // pred_fallthru
      _
  $region6: #{simple_nn_forward.1} parent=0 // loop_footer
    %s16 = sadd.s32 1, %s12
  $region7: #{simple_nn_forward.1} parent=0 // loop_footer_branch
    %11 = sbr.rel target = $region3
  $region8: #{simple_nn_forward.1} parent=0 // loop_exit
    _

</llo_original>
